<compile_context>
chip_gen: v6e
topology: v6e:2x2x1
jax: 0.10.0
libtpu: 0.0.40
codegen_flags: <defaults>
</compile_context>

<pallas_src>
import functools

import jax
import jax.numpy as jnp
from jax.experimental import pallas as pl
from jax.experimental.pallas import tpu as pltpu

EPS = 1e-5
LANE = 128
AUX_ROWS_PER_LAYER = 8  # sublane-aligned blocks in the packed aux slab


def _round_up(n, m=LANE):
    return max(m, ((n + m - 1) // m) * m)


def mlp_decoder_kernel(x_ref, w_ref, aux_ref, out_ref, *,
                       batch, in_p, hid_p, out_p, bin_p):
    inv_b = 1.0 / batch

    def bn_relu(h, a):
        # a rows: 0 = linear bias (added by caller), 1 = gamma, 2 = beta (f32).
        h = jnp.maximum(h, 0.0)
        mean = jnp.sum(h, axis=0, keepdims=True) * inv_b
        c = h - mean
        var = jnp.sum(c * c, axis=0, keepdims=True) * inv_b   # biased, two-pass
        scale = a[1:2, :] * jax.lax.rsqrt(var + EPS)           # EUP rsqrt
        shift = a[2:3, :] - mean * scale
        return h * scale + shift                               # fused affine (f32)

    def aux(layer, width):
        r0 = AUX_ROWS_PER_LAYER * layer
        return aux_ref[r0:r0 + 3, 0:width]

    # Static, tile-aligned slices of the packed bf16 weight slab.
    r = 0
    w1 = w_ref[r:r + in_p, 0:hid_p]; r += in_p
    w2 = w_ref[r:r + hid_p, 0:hid_p]; r += hid_p
    w3 = w_ref[r:r + hid_p, 0:out_p]; r += hid_p
    w4 = w_ref[r:r + out_p, 0:bin_p]

    a1 = aux(0, hid_p)
    a2 = aux(1, hid_p)
    a3 = aux(2, out_p)
    b4 = aux_ref[3 * AUX_ROWS_PER_LAYER:3 * AUX_ROWS_PER_LAYER + 1, 0:bin_p]

    x = x_ref[...]                                             # bf16
    h = jnp.dot(x, w1, preferred_element_type=jnp.float32) + a1[0:1, :]
    h = bn_relu(h, a1).astype(jnp.bfloat16)

    h = jnp.dot(h, w2, preferred_element_type=jnp.float32) + a2[0:1, :]
    h = bn_relu(h, a2).astype(jnp.bfloat16)

    h = jnp.dot(h, w3, preferred_element_type=jnp.float32) + a3[0:1, :]
    h = bn_relu(h, a3).astype(jnp.bfloat16)

    y = jnp.dot(h, w4, preferred_element_type=jnp.float32) + b4
    out_ref[...] = y.astype(out_ref.dtype)


def mlp_decoder(x, params):
    """x: (B, in_dim) f32. params: unpadded weights (fan_in, fan_out) + bn params."""
    B, in_dim = x.shape
    hidden_dim = params["w1"].shape[1]
    out_dim = params["w3"].shape[1]
    binary = params["w4"].shape[1]

    in_p = _round_up(in_dim)
    hid_p = _round_up(hidden_dim)
    out_p = _round_up(out_dim)
    bin_p = _round_up(binary)
    n_max = max(hid_p, out_p, bin_p)

    def pad2(a, rows, cols, dtype):
        a = jnp.asarray(a, jnp.float32)
        a = jnp.pad(a, ((0, rows - a.shape[0]), (0, cols - a.shape[1])))
        return a.astype(dtype)

    bf16 = jnp.bfloat16
    f32 = jnp.float32

    # Zero-padding is exact: padded weight rows/cols are 0, padded biases/betas
    # are 0, so padded activation columns stay identically 0 through relu+BN.
    x_p = pad2(x, B, in_p, bf16)

    # One bf16 weight slab: rows are [w1 | w2 | w3 | w4], all row offsets are
    # multiples of 128 so in-kernel slices stay tile-aligned.
    w_slab = jnp.concatenate([
        pad2(params["w1"], in_p, n_max, bf16),
        pad2(params["w2"], hid_p, n_max, bf16),
        pad2(params["w3"], hid_p, n_max, bf16),
        pad2(params["w4"], out_p, n_max, bf16),
    ], axis=0)

    # One f32 aux slab, 8 rows per layer (rows 0/1/2 = bias/gamma/beta).
    def aux_block(b, g, be):
        rows = [pad2(b, 1, n_max, f32),
                pad2(g, 1, n_max, f32) if g is not None else jnp.zeros((1, n_max), f32),
                pad2(be, 1, n_max, f32) if be is not None else jnp.zeros((1, n_max), f32),
                jnp.zeros((AUX_ROWS_PER_LAYER - 3, n_max), f32)]
        return jnp.concatenate(rows, axis=0)

    aux_slab = jnp.concatenate([
        aux_block(params["b1"], params["g1"], params["be1"]),
        aux_block(params["b2"], params["g2"], params["be2"]),
        aux_block(params["b3"], params["g3"], params["be3"]),
        aux_block(params["b4"], None, None),
    ], axis=0)                                    # (32, n_max) f32

    args = (x_p, w_slab, aux_slab)

    # Per-generation VMEM budget: resident bytes (no double-buffering here)
    # + compiler/DMA headroom, clamped below the physical capacity.
    resident = sum(int(a.size) * a.dtype.itemsize for a in args) + B * bin_p * 4
    try:
        cap = int(getattr(pltpu.get_tpu_info(), "vmem_capacity_bytes", 64 << 20))
    except Exception:  # pragma: no cover - conservative fallback
        cap = 64 << 20
    vmem_limit = min(resident + (8 << 20), cap - (8 << 20))
    vmem_limit = int(max(vmem_limit, 16 << 20))

    kernel = functools.partial(
        mlp_decoder_kernel,
        batch=B, in_p=in_p, hid_p=hid_p, out_p=out_p, bin_p=bin_p)

    vmem_spec = pl.BlockSpec(memory_space=pltpu.MemorySpace.VMEM)
    out_padded = pl.pallas_call(
        kernel,
        out_shape=jax.ShapeDtypeStruct((B, bin_p), jnp.float32),
        in_specs=[vmem_spec] * len(args),
        out_specs=vmem_spec,
        compiler_params=pltpu.CompilerParams(vmem_limit_bytes=vmem_limit),
    )(*args)
    return out_padded[:, :binary]


def init_params(key, in_dim, hidden_dim, out_dim, binary=1):
    """nn.Linear default init (uniform +/- 1/sqrt(fan_in)), BatchNorm1d default
    (gamma=1, beta=0). Weights stored pre-transposed as (fan_in, fan_out)."""
    ks = jax.random.split(key, 8)

    def linear(kw, kb, fan_in, fan_out):
        bound = 1.0 / (fan_in ** 0.5)
        w = jax.random.uniform(kw, (fan_in, fan_out), jnp.float32, -bound, bound)
        b = jax.random.uniform(kb, (1, fan_out), jnp.float32, -bound, bound)
        return w, b

    w1, b1 = linear(ks[0], ks[1], in_dim, hidden_dim)
    w2, b2 = linear(ks[2], ks[3], hidden_dim, hidden_dim)
    w3, b3 = linear(ks[4], ks[5], hidden_dim, out_dim)
    w4, b4 = linear(ks[6], ks[7], out_dim, binary)

    ones = lambda n: jnp.ones((1, n), jnp.float32)
    zeros = lambda n: jnp.zeros((1, n), jnp.float32)
    return dict(
        w1=w1, b1=b1, g1=ones(hidden_dim), be1=zeros(hidden_dim),
        w2=w2, b2=b2, g2=ones(hidden_dim), be2=zeros(hidden_dim),
        w3=w3, b3=b3, g3=ones(out_dim), be3=zeros(out_dim),
        w4=w4, b4=b4,
    )


def mlp_decoder_ref(x, p):
    """Pure-JAX f32 reference (unpadded) for correctness checking."""
    def bn(h, g, b):
        m = jnp.mean(h, axis=0, keepdims=True)
        v = jnp.mean((h - m) ** 2, axis=0, keepdims=True)
        return (h - m) / jnp.sqrt(v + EPS) * g + b

    h = bn(jnp.maximum(x @ p["w1"] + p["b1"], 0.0), p["g1"], p["be1"])
    h = bn(jnp.maximum(h @ p["w2"] + p["b2"], 0.0), p["g2"], p["be2"])
    h = bn(jnp.maximum(h @ p["w3"] + p["b3"], 0.0), p["g3"], p["be3"])
    return h @ p["w4"] + p["b4"]


if __name__ == "__main__":
    key = jax.random.PRNGKey(0)
    k_x, k_p = jax.random.split(key)

    B, in_dim, hidden_dim, out_dim, binary = 8, 16, 32, 16, 1
    x = jax.random.normal(k_x, (B, in_dim), jnp.float32)
    params = init_params(k_p, in_dim, hidden_dim, out_dim, binary)

    out = mlp_decoder(x, params)
    out = jax.block_until_ready(out)

    ref = mlp_decoder_ref(x, params)
    assert out.shape == (B, binary)
    # bf16 MXU path vs f32 reference -> relaxed tolerance (accumulation and BN
    # statistics are still f32, which bounds the error growth).
    assert jnp.allclose(out, ref, atol=5e-2, rtol=5e-2), "mismatch vs pure-JAX reference"

    print("KERNEL_OK")
</pallas_src>

<mosaic_0001>
module attributes {stable_mosaic.version = 11 : i64} {
  func.func @mlp_decoder_kernel(%arg0: memref<8x128xbf16, #tpu.memory_space<vmem>>, %arg1: memref<512x128xbf16, #tpu.memory_space<vmem>>, %arg2: memref<32x128xf32, #tpu.memory_space<vmem>>, %arg3: memref<8x128xf32, #tpu.memory_space<vmem>>) attributes {dimension_semantics = [], scalar_prefetch = 0 : i64, scratch_operands = 0 : i64, tpu.core_type = #tpu.core_type<tc>} {
    %c0 = arith.constant 0 : index
    %c0_0 = arith.constant 0 : index
    %0 = vector.load %arg1[%c0, %c0_0] : memref<512x128xbf16, #tpu.memory_space<vmem>>, vector<128x128xbf16>
    %c128 = arith.constant 128 : index
    %c0_1 = arith.constant 0 : index
    %1 = vector.load %arg1[%c128, %c0_1] : memref<512x128xbf16, #tpu.memory_space<vmem>>, vector<128x128xbf16>
    %c256 = arith.constant 256 : index
    %c0_2 = arith.constant 0 : index
    %2 = vector.load %arg1[%c256, %c0_2] : memref<512x128xbf16, #tpu.memory_space<vmem>>, vector<128x128xbf16>
    %c384 = arith.constant 384 : index
    %c0_3 = arith.constant 0 : index
    %3 = vector.load %arg1[%c384, %c0_3] : memref<512x128xbf16, #tpu.memory_space<vmem>>, vector<128x128xbf16>
    %c0_4 = arith.constant 0 : index
    %c0_5 = arith.constant 0 : index
    %4 = vector.load %arg2[%c0_4, %c0_5] : memref<32x128xf32, #tpu.memory_space<vmem>>, vector<3x128xf32>
    %c8 = arith.constant 8 : index
    %c0_6 = arith.constant 0 : index
    %5 = vector.load %arg2[%c8, %c0_6] : memref<32x128xf32, #tpu.memory_space<vmem>>, vector<3x128xf32>
    %c16 = arith.constant 16 : index
    %c0_7 = arith.constant 0 : index
    %6 = vector.load %arg2[%c16, %c0_7] : memref<32x128xf32, #tpu.memory_space<vmem>>, vector<3x128xf32>
    %c24 = arith.constant 24 : index
    %c0_8 = arith.constant 0 : index
    %7 = vector.load %arg2[%c24, %c0_8] : memref<32x128xf32, #tpu.memory_space<vmem>>, vector<1x128xf32>
    %c0_9 = arith.constant 0 : index
    %c0_10 = arith.constant 0 : index
    %8 = vector.load %arg0[%c0_9, %c0_10] : memref<8x128xbf16, #tpu.memory_space<vmem>>, vector<8x128xbf16>
    %cst = arith.constant dense<0.000000e+00> : vector<8x128xf32>
    %9 = tpu.matmul %8, %0, %cst {dimension_numbers = #tpu.dot_dimension_numbers<[1], [0], [0], [1], [0, 0, 1, 1], [], []>} : vector<8x128xbf16>, vector<128x128xbf16>, vector<8x128xf32> -> vector<8x128xf32>
    %10 = vector.extract_strided_slice %4 {offsets = [0, 0], sizes = [1, 128], strides = [1, 1]} : vector<3x128xf32> to vector<1x128xf32>
    %11 = vector.broadcast %10 : vector<1x128xf32> to vector<8x128xf32>
    %12 = arith.addf %9, %11 : vector<8x128xf32>
    %cst_11 = arith.constant 0.000000e+00 : f32
    %13 = vector.broadcast %cst_11 : f32 to vector<8x128xf32>
    %14 = arith.maximumf %12, %13 : vector<8x128xf32>
    %cst_12 = arith.constant dense<0.000000e+00> : vector<128xf32>
    %15 = vector.multi_reduction <add>, %14, %cst_12 [0] : vector<8x128xf32> to vector<128xf32>
    %16 = vector.shape_cast %15 : vector<128xf32> to vector<1x128xf32>
    %cst_13 = arith.constant 1.250000e-01 : f32
    %17 = vector.broadcast %cst_13 : f32 to vector<1x128xf32>
    %18 = arith.mulf %16, %17 : vector<1x128xf32>
    %19 = vector.broadcast %18 : vector<1x128xf32> to vector<8x128xf32>
    %20 = arith.subf %14, %19 : vector<8x128xf32>
    %21 = arith.mulf %20, %20 : vector<8x128xf32>
    %cst_14 = arith.constant dense<0.000000e+00> : vector<128xf32>
    %22 = vector.multi_reduction <add>, %21, %cst_14 [0] : vector<8x128xf32> to vector<128xf32>
    %23 = vector.shape_cast %22 : vector<128xf32> to vector<1x128xf32>
    %cst_15 = arith.constant 1.250000e-01 : f32
    %24 = vector.broadcast %cst_15 : f32 to vector<1x128xf32>
    %25 = arith.mulf %23, %24 : vector<1x128xf32>
    %26 = vector.extract_strided_slice %4 {offsets = [1, 0], sizes = [1, 128], strides = [1, 1]} : vector<3x128xf32> to vector<1x128xf32>
    %cst_16 = arith.constant 9.99999974E-6 : f32
    %27 = vector.broadcast %cst_16 : f32 to vector<1x128xf32>
    %28 = arith.addf %25, %27 : vector<1x128xf32>
    %29 = math.rsqrt %28 : vector<1x128xf32>
    %30 = arith.mulf %26, %29 : vector<1x128xf32>
    %31 = vector.extract_strided_slice %4 {offsets = [2, 0], sizes = [1, 128], strides = [1, 1]} : vector<3x128xf32> to vector<1x128xf32>
    %32 = arith.mulf %18, %30 : vector<1x128xf32>
    %33 = arith.subf %31, %32 : vector<1x128xf32>
    %34 = vector.broadcast %30 : vector<1x128xf32> to vector<8x128xf32>
    %35 = arith.mulf %14, %34 : vector<8x128xf32>
    %36 = vector.broadcast %33 : vector<1x128xf32> to vector<8x128xf32>
    %37 = arith.addf %35, %36 : vector<8x128xf32>
    %38 = arith.truncf %37 : vector<8x128xf32> to vector<8x128xbf16>
    %cst_17 = arith.constant dense<0.000000e+00> : vector<8x128xf32>
    %39 = tpu.matmul %38, %1, %cst_17 {dimension_numbers = #tpu.dot_dimension_numbers<[1], [0], [0], [1], [0, 0, 1, 1], [], []>} : vector<8x128xbf16>, vector<128x128xbf16>, vector<8x128xf32> -> vector<8x128xf32>
    %40 = vector.extract_strided_slice %5 {offsets = [0, 0], sizes = [1, 128], strides = [1, 1]} : vector<3x128xf32> to vector<1x128xf32>
    %41 = vector.broadcast %40 : vector<1x128xf32> to vector<8x128xf32>
    %42 = arith.addf %39, %41 : vector<8x128xf32>
    %cst_18 = arith.constant 0.000000e+00 : f32
    %43 = vector.broadcast %cst_18 : f32 to vector<8x128xf32>
    %44 = arith.maximumf %42, %43 : vector<8x128xf32>
    %cst_19 = arith.constant dense<0.000000e+00> : vector<128xf32>
    %45 = vector.multi_reduction <add>, %44, %cst_19 [0] : vector<8x128xf32> to vector<128xf32>
    %46 = vector.shape_cast %45 : vector<128xf32> to vector<1x128xf32>
    %cst_20 = arith.constant 1.250000e-01 : f32
    %47 = vector.broadcast %cst_20 : f32 to vector<1x128xf32>
    %48 = arith.mulf %46, %47 : vector<1x128xf32>
    %49 = vector.broadcast %48 : vector<1x128xf32> to vector<8x128xf32>
    %50 = arith.subf %44, %49 : vector<8x128xf32>
    %51 = arith.mulf %50, %50 : vector<8x128xf32>
    %cst_21 = arith.constant dense<0.000000e+00> : vector<128xf32>
    %52 = vector.multi_reduction <add>, %51, %cst_21 [0] : vector<8x128xf32> to vector<128xf32>
    %53 = vector.shape_cast %52 : vector<128xf32> to vector<1x128xf32>
    %cst_22 = arith.constant 1.250000e-01 : f32
    %54 = vector.broadcast %cst_22 : f32 to vector<1x128xf32>
    %55 = arith.mulf %53, %54 : vector<1x128xf32>
    %56 = vector.extract_strided_slice %5 {offsets = [1, 0], sizes = [1, 128], strides = [1, 1]} : vector<3x128xf32> to vector<1x128xf32>
    %cst_23 = arith.constant 9.99999974E-6 : f32
    %57 = vector.broadcast %cst_23 : f32 to vector<1x128xf32>
    %58 = arith.addf %55, %57 : vector<1x128xf32>
    %59 = math.rsqrt %58 : vector<1x128xf32>
    %60 = arith.mulf %56, %59 : vector<1x128xf32>
    %61 = vector.extract_strided_slice %5 {offsets = [2, 0], sizes = [1, 128], strides = [1, 1]} : vector<3x128xf32> to vector<1x128xf32>
    %62 = arith.mulf %48, %60 : vector<1x128xf32>
    %63 = arith.subf %61, %62 : vector<1x128xf32>
    %64 = vector.broadcast %60 : vector<1x128xf32> to vector<8x128xf32>
    %65 = arith.mulf %44, %64 : vector<8x128xf32>
    %66 = vector.broadcast %63 : vector<1x128xf32> to vector<8x128xf32>
    %67 = arith.addf %65, %66 : vector<8x128xf32>
    %68 = arith.truncf %67 : vector<8x128xf32> to vector<8x128xbf16>
    %cst_24 = arith.constant dense<0.000000e+00> : vector<8x128xf32>
    %69 = tpu.matmul %68, %2, %cst_24 {dimension_numbers = #tpu.dot_dimension_numbers<[1], [0], [0], [1], [0, 0, 1, 1], [], []>} : vector<8x128xbf16>, vector<128x128xbf16>, vector<8x128xf32> -> vector<8x128xf32>
    %70 = vector.extract_strided_slice %6 {offsets = [0, 0], sizes = [1, 128], strides = [1, 1]} : vector<3x128xf32> to vector<1x128xf32>
    %71 = vector.broadcast %70 : vector<1x128xf32> to vector<8x128xf32>
    %72 = arith.addf %69, %71 : vector<8x128xf32>
    %cst_25 = arith.constant 0.000000e+00 : f32
    %73 = vector.broadcast %cst_25 : f32 to vector<8x128xf32>
    %74 = arith.maximumf %72, %73 : vector<8x128xf32>
    %cst_26 = arith.constant dense<0.000000e+00> : vector<128xf32>
    %75 = vector.multi_reduction <add>, %74, %cst_26 [0] : vector<8x128xf32> to vector<128xf32>
    %76 = vector.shape_cast %75 : vector<128xf32> to vector<1x128xf32>
    %cst_27 = arith.constant 1.250000e-01 : f32
    %77 = vector.broadcast %cst_27 : f32 to vector<1x128xf32>
    %78 = arith.mulf %76, %77 : vector<1x128xf32>
    %79 = vector.broadcast %78 : vector<1x128xf32> to vector<8x128xf32>
    %80 = arith.subf %74, %79 : vector<8x128xf32>
    %81 = arith.mulf %80, %80 : vector<8x128xf32>
    %cst_28 = arith.constant dense<0.000000e+00> : vector<128xf32>
    %82 = vector.multi_reduction <add>, %81, %cst_28 [0] : vector<8x128xf32> to vector<128xf32>
    %83 = vector.shape_cast %82 : vector<128xf32> to vector<1x128xf32>
    %cst_29 = arith.constant 1.250000e-01 : f32
    %84 = vector.broadcast %cst_29 : f32 to vector<1x128xf32>
    %85 = arith.mulf %83, %84 : vector<1x128xf32>
    %86 = vector.extract_strided_slice %6 {offsets = [1, 0], sizes = [1, 128], strides = [1, 1]} : vector<3x128xf32> to vector<1x128xf32>
    %cst_30 = arith.constant 9.99999974E-6 : f32
    %87 = vector.broadcast %cst_30 : f32 to vector<1x128xf32>
    %88 = arith.addf %85, %87 : vector<1x128xf32>
    %89 = math.rsqrt %88 : vector<1x128xf32>
    %90 = arith.mulf %86, %89 : vector<1x128xf32>
    %91 = vector.extract_strided_slice %6 {offsets = [2, 0], sizes = [1, 128], strides = [1, 1]} : vector<3x128xf32> to vector<1x128xf32>
    %92 = arith.mulf %78, %90 : vector<1x128xf32>
    %93 = arith.subf %91, %92 : vector<1x128xf32>
    %94 = vector.broadcast %90 : vector<1x128xf32> to vector<8x128xf32>
    %95 = arith.mulf %74, %94 : vector<8x128xf32>
    %96 = vector.broadcast %93 : vector<1x128xf32> to vector<8x128xf32>
    %97 = arith.addf %95, %96 : vector<8x128xf32>
    %98 = arith.truncf %97 : vector<8x128xf32> to vector<8x128xbf16>
    %cst_31 = arith.constant dense<0.000000e+00> : vector<8x128xf32>
    %99 = tpu.matmul %98, %3, %cst_31 {dimension_numbers = #tpu.dot_dimension_numbers<[1], [0], [0], [1], [0, 0, 1, 1], [], []>} : vector<8x128xbf16>, vector<128x128xbf16>, vector<8x128xf32> -> vector<8x128xf32>
    %100 = vector.broadcast %7 : vector<1x128xf32> to vector<8x128xf32>
    %101 = arith.addf %99, %100 : vector<8x128xf32>
    %c0_32 = arith.constant 0 : index
    %c0_33 = arith.constant 0 : index
    %102 = vector.load %arg3[%c0_32, %c0_33] : memref<8x128xf32, #tpu.memory_space<vmem>>, vector<8x128xf32>
    tpu.vector_store %arg3[%c0_32, %c0_33], %101 {strides = array<i32>} : memref<8x128xf32, #tpu.memory_space<vmem>>, vector<8x128xf32>,
    return
  }
}

</mosaic_0001>

<llo_original>
// kernel: tpu_custom_call.1
$region0: #{tpu_custom_call.1}
  #allocation0 [shape = 'u32[]', space=smem, size = 0x4, offset = 0x4, fixed_abs, tag = 'smem constant byte address 0x4 - core index']
  #allocation1 [shape = 'u32[144,128]{1,0:T(1,128)}', space=vmem, size = 0x12000, scoped, tag = 'internal scratch']
  %s0 = inlined_call_operand.hbm [shape: bf16[8,128], index: 0, kind: input, shape index: {}]
  %s1 = inlined_call_operand.hbm [shape: bf16[512,128], index: 1, kind: input, shape index: {}]
  %s2 = inlined_call_operand.hbm [shape: f32[32,128], index: 2, kind: input, shape index: {}]
  %s3 = inlined_call_operand.hbm [shape: f32[8,128], index: 3, kind: output, shape index: {}]
  %s4 = sld [smem:[#allocation0]]
  $region34: #{tpu_custom_call.1} parent=0
    _
  %s6 = ssub.s32 1, %s4
  %s7 = scalar_select 0, %s6, %s4
  $region1: #{tpu_custom_call.1} parent=0
    #allocation2 [shape = 'u8[2048]{0}', space=vmem, size = 0x800, scoped, tag = 'input window, operand 0, single buffered']
    #allocation3 [shape = 's32[1]{0}', space=sflag, size = 0x4, scoped, tag = 'scoped memory for tpu_custom_call.1']
    #allocation4 [shape = 's32[1]{0}', space=sflag, size = 0x4, scoped, tag = 'scoped memory for tpu_custom_call.1']
    #allocation5 [shape = 'u8[131072]{0}', space=vmem, size = 0x20000, scoped, tag = 'input window, operand 1, single buffered']
    #allocation6 [shape = 's32[1]{0}', space=sflag, size = 0x4, scoped, tag = 'scoped memory for tpu_custom_call.1']
    #allocation7 [shape = 'u8[16384]{0}', space=vmem, size = 0x4000, scoped, tag = 'input window, operand 2, single buffered']
    #allocation8 [shape = 'u8[4096]{0}', space=vmem, size = 0x1000, scoped, tag = 'output window, operand 0, single buffered']
    %8 = vsyncpa [#allocation3], 0
    %9 = vsyncpa [#allocation6], 0
    %10 = vsyncpa [#allocation4], 0
    // Predicated region
    $region2: #{tpu_custom_call.1} parent=1 // pred_check
      _
    $region3: #{tpu_custom_call.1} parent=1 // pred_check_branch
      %12 = sbr.rel (0) target = $region5
    $region4: #{tpu_custom_call.1} parent=1 // pred_region
      %s14 = ssub.s32 64, 64
      %15 = vsyncadd [#allocation3], %s14
      %s17 = sshll.u32 [#allocation2], 4
      %s18 = int_to_ptr.vmem [resolvable:$true] %s17
      %20 = dma.hbm_to_vmem [thread:$0]  %s0, 64, %s18, [#allocation3]
    $region5: #{tpu_custom_call.1} parent=1 // pred_fallthru
      _
    // Predicated region
    $region6: #{tpu_custom_call.1} parent=1 // pred_check
      _
    $region7: #{tpu_custom_call.1} parent=1 // pred_check_branch
      %22 = sbr.rel (0) target = $region9
    $region8: #{tpu_custom_call.1} parent=1 // pred_region
      %s24 = ssub.s32 4096, 4096
      %25 = vsyncadd [#allocation6], %s24
      %s26 = sshll.u32 [#allocation5], 4
      %s27 = int_to_ptr.vmem [resolvable:$true] %s26
      %32 = dma.hbm_to_vmem [thread:$0]  %s1, 4096, %s27, [#allocation6], 64, 64, 4
    $region9: #{tpu_custom_call.1} parent=1 // pred_fallthru
      _
    // Predicated region
    $region10: #{tpu_custom_call.1} parent=1 // pred_check
      _
    $region11: #{tpu_custom_call.1} parent=1 // pred_check_branch
      %34 = sbr.rel (0) target = $region13
    $region12: #{tpu_custom_call.1} parent=1 // pred_region
      %s36 = ssub.s32 512, 512
      %37 = vsyncadd [#allocation6], %s36
      %s38 = sshll.u32 [#allocation7], 4
      %s39 = int_to_ptr.vmem [resolvable:$true] %s38
      %44 = dma.hbm_to_vmem [thread:$0]  %s2, 512, %s39, [#allocation6], 128, 128, 8
    $region13: #{tpu_custom_call.1} parent=1 // pred_fallthru
      _
    // Predicated region
    $region14: #{tpu_custom_call.1} parent=1 // pred_check
      _
    $region15: #{tpu_custom_call.1} parent=1 // pred_check_branch
      %46 = sbr.rel (0) target = $region17
    $region16: #{tpu_custom_call.1} parent=1 // pred_region
      %47 = dma.done [#allocation3], 64
    $region17: #{tpu_custom_call.1} parent=1 // pred_fallthru
      _
    // Predicated region
    $region18: #{tpu_custom_call.1} parent=1 // pred_check
      _
    $region19: #{tpu_custom_call.1} parent=1 // pred_check_branch
      %49 = sbr.rel (0) target = $region21
    $region20: #{tpu_custom_call.1} parent=1 // pred_region
      %50 = dma.done [#allocation6], 4096
    $region21: #{tpu_custom_call.1} parent=1 // pred_fallthru
      _
    // Predicated region
    $region22: #{tpu_custom_call.1} parent=1 // pred_check
      _
    $region23: #{tpu_custom_call.1} parent=1 // pred_check_branch
      %52 = sbr.rel (0) target = $region25
    $region24: #{tpu_custom_call.1} parent=1 // pred_region
      %53 = dma.done [#allocation6], 512
    $region25: #{tpu_custom_call.1} parent=1 // pred_fallthru
      _
    %v55 = vld [vmem:[#allocation5] sm:$0xf]
    %v56 = vld [vmem:[#allocation5 + $0x4] sm:$0xf]
    %v57 = vld [vmem:[#allocation5 + $0x8] sm:$0xf]
    %v58 = vld [vmem:[#allocation5 + $0xc] sm:$0xf]
    %v59 = vld [vmem:[#allocation5 + $0x10] sm:$0xf]
    %v60 = vld [vmem:[#allocation5 + $0x14] sm:$0xf]
    %v61 = vld [vmem:[#allocation5 + $0x18] sm:$0xf]
    %v62 = vld [vmem:[#allocation5 + $0x1c] sm:$0xf]
    %v63 = vld [vmem:[#allocation5 + $0x20] sm:$0xf]
    %v64 = vld [vmem:[#allocation5 + $0x24] sm:$0xf]
    %v65 = vld [vmem:[#allocation5 + $0x28] sm:$0xf]
    %v66 = vld [vmem:[#allocation5 + $0x2c] sm:$0xf]
    %v67 = vld [vmem:[#allocation5 + $0x30] sm:$0xf]
    %v68 = vld [vmem:[#allocation5 + $0x34] sm:$0xf]
    %v69 = vld [vmem:[#allocation5 + $0x38] sm:$0xf]
    %v70 = vld [vmem:[#allocation5 + $0x3c] sm:$0xf]
    %v71 = vld [vmem:[#allocation5 + $0x40] sm:$0xf]
    %v72 = vld [vmem:[#allocation5 + $0x44] sm:$0xf]
    %v73 = vld [vmem:[#allocation5 + $0x48] sm:$0xf]
    %v74 = vld [vmem:[#allocation5 + $0x4c] sm:$0xf]
    %v75 = vld [vmem:[#allocation5 + $0x50] sm:$0xf]
    %v76 = vld [vmem:[#allocation5 + $0x54] sm:$0xf]
    %v77 = vld [vmem:[#allocation5 + $0x58] sm:$0xf]
    %v78 = vld [vmem:[#allocation5 + $0x5c] sm:$0xf]
    %v79 = vld [vmem:[#allocation5 + $0x60] sm:$0xf]
    %v80 = vld [vmem:[#allocation5 + $0x64] sm:$0xf]
    %v81 = vld [vmem:[#allocation5 + $0x68] sm:$0xf]
    %v82 = vld [vmem:[#allocation5 + $0x6c] sm:$0xf]
    %v83 = vld [vmem:[#allocation5 + $0x70] sm:$0xf]
    %v84 = vld [vmem:[#allocation5 + $0x74] sm:$0xf]
    %v85 = vld [vmem:[#allocation5 + $0x78] sm:$0xf]
    %v86 = vld [vmem:[#allocation5 + $0x7c] sm:$0xf]
    %v87 = vld [vmem:[#allocation5 + $0x80] sm:$0xf]
    %v88 = vld [vmem:[#allocation5 + $0x84] sm:$0xf]
    %v89 = vld [vmem:[#allocation5 + $0x88] sm:$0xf]
    %v90 = vld [vmem:[#allocation5 + $0x8c] sm:$0xf]
    %v91 = vld [vmem:[#allocation5 + $0x90] sm:$0xf]
    %v92 = vld [vmem:[#allocation5 + $0x94] sm:$0xf]
    %v93 = vld [vmem:[#allocation5 + $0x98] sm:$0xf]
    %v94 = vld [vmem:[#allocation5 + $0x9c] sm:$0xf]
    %v95 = vld [vmem:[#allocation5 + $0xa0] sm:$0xf]
    %v96 = vld [vmem:[#allocation5 + $0xa4] sm:$0xf]
    %v97 = vld [vmem:[#allocation5 + $0xa8] sm:$0xf]
    %v98 = vld [vmem:[#allocation5 + $0xac] sm:$0xf]
    %v99 = vld [vmem:[#allocation5 + $0xb0] sm:$0xf]
    %v100 = vld [vmem:[#allocation5 + $0xb4] sm:$0xf]
    %v101 = vld [vmem:[#allocation5 + $0xb8] sm:$0xf]
    %v102 = vld [vmem:[#allocation5 + $0xbc] sm:$0xf]
    %v103 = vld [vmem:[#allocation5 + $0xc0] sm:$0xf]
    %v104 = vld [vmem:[#allocation5 + $0xc4] sm:$0xf]
    %v105 = vld [vmem:[#allocation5 + $0xc8] sm:$0xf]
    %v106 = vld [vmem:[#allocation5 + $0xcc] sm:$0xf]
    %v107 = vld [vmem:[#allocation5 + $0xd0] sm:$0xf]
    %v108 = vld [vmem:[#allocation5 + $0xd4] sm:$0xf]
    %v109 = vld [vmem:[#allocation5 + $0xd8] sm:$0xf]
    %v110 = vld [vmem:[#allocation5 + $0xdc] sm:$0xf]
    %v111 = vld [vmem:[#allocation5 + $0xe0] sm:$0xf]
    %v112 = vld [vmem:[#allocation5 + $0xe4] sm:$0xf]
    %v113 = vld [vmem:[#allocation5 + $0xe8] sm:$0xf]
    %v114 = vld [vmem:[#allocation5 + $0xec] sm:$0xf]
    %v115 = vld [vmem:[#allocation5 + $0xf0] sm:$0xf]
    %v116 = vld [vmem:[#allocation5 + $0xf4] sm:$0xf]
    %v117 = vld [vmem:[#allocation5 + $0xf8] sm:$0xf]
    %v118 = vld [vmem:[#allocation5 + $0xfc] sm:$0xf]
    %v119 = vld [vmem:[#allocation7] sm:$0x7]
    %v120 = vld [vmem:[#allocation7 + $0x8] sm:$0x7]
    %v121 = vld [vmem:[#allocation7 + $0x10] sm:$0x7]
    %v122 = vld [vmem:[#allocation7 + $0x18] sm:$0x1]
    %v123 = vld [vmem:[#allocation2] sm:$0xf]
    %v124 = vlaneseq
    %v125 = vshrl.u32 %v124, 7
    %v126 = vsub.s32 0, %v125
    %v127 = vrot.slane %v119, %v126
    %v144 = vunpack.c.l.b16 %v55
    %v145 = vunpack.c.l.b16 %v56
    %v146 = vunpack.c.l.b16 %v57
    %v147 = vunpack.c.l.b16 %v58
    %v148 = vunpack.c.l.b16 %v59
    %v149 = vunpack.c.l.b16 %v60
    %v150 = vunpack.c.l.b16 %v61
    %v151 = vunpack.c.l.b16 %v62
    %v152 = vunpack.c.l.b16 %v63
    %v153 = vunpack.c.l.b16 %v64
    %v154 = vunpack.c.l.b16 %v65
    %v155 = vunpack.c.l.b16 %v66
    %v156 = vunpack.c.l.b16 %v67
    %v157 = vunpack.c.l.b16 %v68
    %v158 = vunpack.c.l.b16 %v69
    %v159 = vunpack.c.l.b16 %v70
    %v160 = vpack.c.b16 %v145, %v144
    %v161 = vpack.c.b16 %v147, %v146
    %v162 = vpack.c.b16 %v149, %v148
    %v163 = vpack.c.b16 %v151, %v150
    %v164 = vpack.c.b16 %v153, %v152
    %v165 = vpack.c.b16 %v155, %v154
    %v166 = vpack.c.b16 %v157, %v156
    %v167 = vpack.c.b16 %v159, %v158
    %176 = vmatprep.subr.bf16.mxu0 0
    %177 = vmatpush1.bf16.msra.mxu0 %v167
    %178 = vmatprep.subr.bf16.mxu0 0
    %179 = vmatpush1.bf16.msra.mxu0 %v166
    %180 = vmatprep.subr.bf16.mxu0 0
    %181 = vmatpush1.bf16.msra.mxu0 %v165
    %182 = vmatprep.subr.bf16.mxu0 0
    %183 = vmatpush1.bf16.msra.mxu0 %v164
    %184 = vmatprep.subr.bf16.mxu0 0
    %185 = vmatpush1.bf16.msra.mxu0 %v163
    %186 = vmatprep.subr.bf16.mxu0 0
    %187 = vmatpush1.bf16.msra.mxu0 %v162
    %188 = vmatprep.subr.bf16.mxu0 0
    %189 = vmatpush1.bf16.msra.mxu0 %v161
    %190 = vmatprep.subr.bf16.mxu0 0
    %191 = vmatpush1.bf16.msra.mxu0 %v160
    %192 = vmatprep.subr.bf16.mxu0 0
    %193 = vmatpush2.bf16.msra.mxu0 0
    %194 = vmatprep.subr.bf16.mxu0 0
    %195 = vmatpush2.bf16.msra.mxu0 0
    %196 = vmatprep.subr.bf16.mxu0 0
    %197 = vmatpush2.bf16.msra.mxu0 0
    %198 = vmatprep.subr.bf16.mxu0 0
    %199 = vmatpush2.bf16.msra.mxu0 0
    %200 = vmatprep.subr.bf16.mxu0 0
    %201 = vmatpush2.bf16.msra.mxu0 0
    %202 = vmatprep.subr.bf16.mxu0 0
    %203 = vmatpush2.bf16.msra.mxu0 0
    %204 = vmatprep.subr.bf16.mxu0 0
    %205 = vmatpush2.bf16.msra.mxu0 0
    %206 = vmatprep.subr.bf16.mxu0 0
    %207 = vmatpush2.bf16.msra.mxu0 0
    %208 = vmatprep.mubr.bf16.mxu0 0
    %209 = vmatmul.mubr.bf16.gmra.mxu0 %v123
    %v210 = vpop.f32.mrf.mxu0
    %v211 = vadd.f32 %v127, %v210
    %v212 = vpop.f32.mrf.mxu0
    %v213 = vpop.f32.mrf.mxu0
    %v214 = vpop.f32.mrf.mxu0
    %215 = vdwg.mxu0
    %v216 = vmax.f32 %v211, 0.0
    %v217 = vrot.slane %v216, 4
    %v218 = vadd.f32 %v216, %v217
    %v219 = vrot.slane %v218, 2
    %v220 = vadd.f32 %v218, %v219
    %v221 = vrot.slane %v220, 1
    %v222 = vadd.f32 %v220, %v221
    %v223 = vmul.f32 %v222, 0.125
    %v224 = vsub.f32 %v216, %v223
    %v225 = vmul.f32 %v224, %v224
    %v226 = vrot.slane %v225, 4
    %v227 = vadd.f32 %v225, %v226
    %v228 = vrot.slane %v227, 2
    %v229 = vadd.f32 %v227, %v228
    %v230 = vrot.slane %v229, 1
    %v231 = vadd.f32 %v229, %v230
    %v232 = vmul.f32 %v231, 0.125
    %v233 = vadd.f32 %v232, 1e-05
    %v234 = vrsqrt.pop %v233
    %v235 = vmul.f32 %v119, %v234
    %v236 = vmul.f32 %v223, %v235
    %v238 = vrot.slane %v236, 7
    %v240 = vsub.f32 %v119, %v238
    %v241 = vlaneseq
    %v242 = vshrl.u32 %v241, 7
    %v243 = vsub.s32 1, %v242
    %v244 = vrot.slane %v235, %v243
    %v245 = vmul.f32 %v216, %v244
    %v246 = vlaneseq
    %v247 = vshrl.u32 %v246, 7
    %v248 = vsub.s32 2, %v247
    %v249 = vrot.slane %v240, %v248
    %v250 = vadd.f32 %v245, %v249
    %v251 = vpack.c.bf16 %v250, %v250
    %v252 = vlaneseq
    %v253 = vshrl.u32 %v252, 7
    %v254 = vsub.s32 0, %v253
    %v255 = vrot.slane %v120, %v254
    %v272 = vunpack.c.l.b16 %v71
    %v273 = vunpack.c.l.b16 %v72
    %v274 = vunpack.c.l.b16 %v73
    %v275 = vunpack.c.l.b16 %v74
    %v276 = vunpack.c.l.b16 %v75
    %v277 = vunpack.c.l.b16 %v76
    %v278 = vunpack.c.l.b16 %v77
    %v279 = vunpack.c.l.b16 %v78
    %v280 = vunpack.c.l.b16 %v79
    %v281 = vunpack.c.l.b16 %v80
    %v282 = vunpack.c.l.b16 %v81
    %v283 = vunpack.c.l.b16 %v82
    %v284 = vunpack.c.l.b16 %v83
    %v285 = vunpack.c.l.b16 %v84
    %v286 = vunpack.c.l.b16 %v85
    %v287 = vunpack.c.l.b16 %v86
    %v288 = vpack.c.b16 %v273, %v272
    %v289 = vpack.c.b16 %v275, %v274
    %v290 = vpack.c.b16 %v277, %v276
    %v291 = vpack.c.b16 %v279, %v278
    %v292 = vpack.c.b16 %v281, %v280
    %v293 = vpack.c.b16 %v283, %v282
    %v294 = vpack.c.b16 %v285, %v284
    %v295 = vpack.c.b16 %v287, %v286
    %304 = vmatprep.subr.bf16.mxu0 0
    %305 = vmatpush1.bf16.msra.mxu0 %v295
    %306 = vmatprep.subr.bf16.mxu0 0
    %307 = vmatpush1.bf16.msra.mxu0 %v294
    %308 = vmatprep.subr.bf16.mxu0 0
    %309 = vmatpush1.bf16.msra.mxu0 %v293
    %310 = vmatprep.subr.bf16.mxu0 0
    %311 = vmatpush1.bf16.msra.mxu0 %v292
    %312 = vmatprep.subr.bf16.mxu0 0
    %313 = vmatpush1.bf16.msra.mxu0 %v291
    %314 = vmatprep.subr.bf16.mxu0 0
    %315 = vmatpush1.bf16.msra.mxu0 %v290
    %316 = vmatprep.subr.bf16.mxu0 0
    %317 = vmatpush1.bf16.msra.mxu0 %v289
    %318 = vmatprep.subr.bf16.mxu0 0
    %319 = vmatpush1.bf16.msra.mxu0 %v288
    %320 = vmatprep.subr.bf16.mxu0 0
    %321 = vmatpush2.bf16.msra.mxu0 0
    %322 = vmatprep.subr.bf16.mxu0 0
    %323 = vmatpush2.bf16.msra.mxu0 0
    %324 = vmatprep.subr.bf16.mxu0 0
    %325 = vmatpush2.bf16.msra.mxu0 0
    %326 = vmatprep.subr.bf16.mxu0 0
    %327 = vmatpush2.bf16.msra.mxu0 0
    %328 = vmatprep.subr.bf16.mxu0 0
    %329 = vmatpush2.bf16.msra.mxu0 0
    %330 = vmatprep.subr.bf16.mxu0 0
    %331 = vmatpush2.bf16.msra.mxu0 0
    %332 = vmatprep.subr.bf16.mxu0 0
    %333 = vmatpush2.bf16.msra.mxu0 0
    %334 = vmatprep.subr.bf16.mxu0 0
    %335 = vmatpush2.bf16.msra.mxu0 0
    %336 = vmatprep.mubr.bf16.mxu0 0
    %337 = vmatmul.mubr.bf16.gmra.mxu0 %v251
    %v338 = vpop.f32.mrf.mxu0
    %v339 = vadd.f32 %v255, %v338
    %v340 = vpop.f32.mrf.mxu0
    %v341 = vpop.f32.mrf.mxu0
    %v342 = vpop.f32.mrf.mxu0
    %343 = vdwg.mxu0
    %v344 = vmax.f32 %v339, 0.0
    %v345 = vrot.slane %v344, 4
    %v346 = vadd.f32 %v344, %v345
    %v347 = vrot.slane %v346, 2
    %v348 = vadd.f32 %v346, %v347
    %v349 = vrot.slane %v348, 1
    %v350 = vadd.f32 %v348, %v349
    %v351 = vmul.f32 %v350, 0.125
    %v352 = vsub.f32 %v344, %v351
    %v353 = vmul.f32 %v352, %v352
    %v354 = vrot.slane %v353, 4
    %v355 = vadd.f32 %v353, %v354
    %v356 = vrot.slane %v355, 2
    %v357 = vadd.f32 %v355, %v356
    %v358 = vrot.slane %v357, 1
    %v359 = vadd.f32 %v357, %v358
    %v360 = vmul.f32 %v359, 0.125
    %v361 = vadd.f32 %v360, 1e-05
    %v362 = vrsqrt.pop %v361
    %v363 = vmul.f32 %v120, %v362
    %v364 = vmul.f32 %v351, %v363
    %v366 = vrot.slane %v364, 7
    %v368 = vsub.f32 %v120, %v366
    %v369 = vlaneseq
    %v370 = vshrl.u32 %v369, 7
    %v371 = vsub.s32 1, %v370
    %v372 = vrot.slane %v363, %v371
    %v373 = vmul.f32 %v344, %v372
    %v374 = vlaneseq
    %v375 = vshrl.u32 %v374, 7
    %v376 = vsub.s32 2, %v375
    %v377 = vrot.slane %v368, %v376
    %v378 = vadd.f32 %v373, %v377
    %v379 = vpack.c.bf16 %v378, %v378
    %v380 = vlaneseq
    %v381 = vshrl.u32 %v380, 7
    %v382 = vsub.s32 0, %v381
    %v383 = vrot.slane %v121, %v382
    %v400 = vunpack.c.l.b16 %v87
    %v401 = vunpack.c.l.b16 %v88
    %v402 = vunpack.c.l.b16 %v89
    %v403 = vunpack.c.l.b16 %v90
    %v404 = vunpack.c.l.b16 %v91
    %v405 = vunpack.c.l.b16 %v92
    %v406 = vunpack.c.l.b16 %v93
    %v407 = vunpack.c.l.b16 %v94
    %v408 = vunpack.c.l.b16 %v95
    %v409 = vunpack.c.l.b16 %v96
    %v410 = vunpack.c.l.b16 %v97
    %v411 = vunpack.c.l.b16 %v98
    %v412 = vunpack.c.l.b16 %v99
    %v413 = vunpack.c.l.b16 %v100
    %v414 = vunpack.c.l.b16 %v101
    %v415 = vunpack.c.l.b16 %v102
    %v416 = vpack.c.b16 %v401, %v400
    %v417 = vpack.c.b16 %v403, %v402
    %v418 = vpack.c.b16 %v405, %v404
    %v419 = vpack.c.b16 %v407, %v406
    %v420 = vpack.c.b16 %v409, %v408
    %v421 = vpack.c.b16 %v411, %v410
    %v422 = vpack.c.b16 %v413, %v412
    %v423 = vpack.c.b16 %v415, %v414
    %432 = vmatprep.subr.bf16.mxu0 0
    %433 = vmatpush1.bf16.msra.mxu0 %v423
    %434 = vmatprep.subr.bf16.mxu0 0
    %435 = vmatpush1.bf16.msra.mxu0 %v422
    %436 = vmatprep.subr.bf16.mxu0 0
    %437 = vmatpush1.bf16.msra.mxu0 %v421
    %438 = vmatprep.subr.bf16.mxu0 0
    %439 = vmatpush1.bf16.msra.mxu0 %v420
    %440 = vmatprep.subr.bf16.mxu0 0
    %441 = vmatpush1.bf16.msra.mxu0 %v419
    %442 = vmatprep.subr.bf16.mxu0 0
    %443 = vmatpush1.bf16.msra.mxu0 %v418
    %444 = vmatprep.subr.bf16.mxu0 0
    %445 = vmatpush1.bf16.msra.mxu0 %v417
    %446 = vmatprep.subr.bf16.mxu0 0
    %447 = vmatpush1.bf16.msra.mxu0 %v416
    %448 = vmatprep.subr.bf16.mxu0 0
    %449 = vmatpush2.bf16.msra.mxu0 0
    %450 = vmatprep.subr.bf16.mxu0 0
    %451 = vmatpush2.bf16.msra.mxu0 0
    %452 = vmatprep.subr.bf16.mxu0 0
    %453 = vmatpush2.bf16.msra.mxu0 0
    %454 = vmatprep.subr.bf16.mxu0 0
    %455 = vmatpush2.bf16.msra.mxu0 0
    %456 = vmatprep.subr.bf16.mxu0 0
    %457 = vmatpush2.bf16.msra.mxu0 0
    %458 = vmatprep.subr.bf16.mxu0 0
    %459 = vmatpush2.bf16.msra.mxu0 0
    %460 = vmatprep.subr.bf16.mxu0 0
    %461 = vmatpush2.bf16.msra.mxu0 0
    %462 = vmatprep.subr.bf16.mxu0 0
    %463 = vmatpush2.bf16.msra.mxu0 0
    %464 = vmatprep.mubr.bf16.mxu0 0
    %465 = vmatmul.mubr.bf16.gmra.mxu0 %v379
    %v466 = vpop.f32.mrf.mxu0
    %v467 = vadd.f32 %v383, %v466
    %v468 = vpop.f32.mrf.mxu0
    %v469 = vpop.f32.mrf.mxu0
    %v470 = vpop.f32.mrf.mxu0
    %471 = vdwg.mxu0
    %v472 = vmax.f32 %v467, 0.0
    %v473 = vrot.slane %v472, 4
    %v474 = vadd.f32 %v472, %v473
    %v475 = vrot.slane %v474, 2
    %v476 = vadd.f32 %v474, %v475
    %v477 = vrot.slane %v476, 1
    %v478 = vadd.f32 %v476, %v477
    %v479 = vmul.f32 %v478, 0.125
    %v480 = vsub.f32 %v472, %v479
    %v481 = vmul.f32 %v480, %v480
    %v482 = vrot.slane %v481, 4
    %v483 = vadd.f32 %v481, %v482
    %v484 = vrot.slane %v483, 2
    %v485 = vadd.f32 %v483, %v484
    %v486 = vrot.slane %v485, 1
    %v487 = vadd.f32 %v485, %v486
    %v488 = vmul.f32 %v487, 0.125
    %v489 = vadd.f32 %v488, 1e-05
    %v490 = vrsqrt.pop %v489
    %v491 = vmul.f32 %v121, %v490
    %v492 = vmul.f32 %v479, %v491
    %v494 = vrot.slane %v492, 7
    %v496 = vsub.f32 %v121, %v494
    %v497 = vlaneseq
    %v498 = vshrl.u32 %v497, 7
    %v499 = vsub.s32 1, %v498
    %v500 = vrot.slane %v491, %v499
    %v501 = vmul.f32 %v472, %v500
    %v502 = vlaneseq
    %v503 = vshrl.u32 %v502, 7
    %v504 = vsub.s32 2, %v503
    %v505 = vrot.slane %v496, %v504
    %v506 = vadd.f32 %v501, %v505
    %v507 = vpack.c.bf16 %v506, %v506
    %v508 = vlaneseq
    %v509 = vshrl.u32 %v508, 7
    %v510 = vsub.s32 0, %v509
    %v511 = vrot.slane %v122, %v510
    %v528 = vunpack.c.l.b16 %v103
    %v529 = vunpack.c.l.b16 %v104
    %v530 = vunpack.c.l.b16 %v105
    %v531 = vunpack.c.l.b16 %v106
    %v532 = vunpack.c.l.b16 %v107
    %v533 = vunpack.c.l.b16 %v108
    %v534 = vunpack.c.l.b16 %v109
    %v535 = vunpack.c.l.b16 %v110
    %v536 = vunpack.c.l.b16 %v111
    %v537 = vunpack.c.l.b16 %v112
    %v538 = vunpack.c.l.b16 %v113
    %v539 = vunpack.c.l.b16 %v114
    %v540 = vunpack.c.l.b16 %v115
    %v541 = vunpack.c.l.b16 %v116
    %v542 = vunpack.c.l.b16 %v117
    %v543 = vunpack.c.l.b16 %v118
    %v544 = vpack.c.b16 %v529, %v528
    %v545 = vpack.c.b16 %v531, %v530
    %v546 = vpack.c.b16 %v533, %v532
    %v547 = vpack.c.b16 %v535, %v534
    %v548 = vpack.c.b16 %v537, %v536
    %v549 = vpack.c.b16 %v539, %v538
    %v550 = vpack.c.b16 %v541, %v540
    %v551 = vpack.c.b16 %v543, %v542
    %560 = vmatprep.subr.bf16.mxu0 0
    %561 = vmatpush1.bf16.msra.mxu0 %v551
    %562 = vmatprep.subr.bf16.mxu0 0
    %563 = vmatpush1.bf16.msra.mxu0 %v550
    %564 = vmatprep.subr.bf16.mxu0 0
    %565 = vmatpush1.bf16.msra.mxu0 %v549
    %566 = vmatprep.subr.bf16.mxu0 0
    %567 = vmatpush1.bf16.msra.mxu0 %v548
    %568 = vmatprep.subr.bf16.mxu0 0
    %569 = vmatpush1.bf16.msra.mxu0 %v547
    %570 = vmatprep.subr.bf16.mxu0 0
    %571 = vmatpush1.bf16.msra.mxu0 %v546
    %572 = vmatprep.subr.bf16.mxu0 0
    %573 = vmatpush1.bf16.msra.mxu0 %v545
    %574 = vmatprep.subr.bf16.mxu0 0
    %575 = vmatpush1.bf16.msra.mxu0 %v544
    %576 = vmatprep.subr.bf16.mxu0 0
    %577 = vmatpush2.bf16.msra.mxu0 0
    %578 = vmatprep.subr.bf16.mxu0 0
    %579 = vmatpush2.bf16.msra.mxu0 0
    %580 = vmatprep.subr.bf16.mxu0 0
    %581 = vmatpush2.bf16.msra.mxu0 0
    %582 = vmatprep.subr.bf16.mxu0 0
    %583 = vmatpush2.bf16.msra.mxu0 0
    %584 = vmatprep.subr.bf16.mxu0 0
    %585 = vmatpush2.bf16.msra.mxu0 0
    %586 = vmatprep.subr.bf16.mxu0 0
    %587 = vmatpush2.bf16.msra.mxu0 0
    %588 = vmatprep.subr.bf16.mxu0 0
    %589 = vmatpush2.bf16.msra.mxu0 0
    %590 = vmatprep.subr.bf16.mxu0 0
    %591 = vmatpush2.bf16.msra.mxu0 0
    %592 = vmatprep.mubr.bf16.mxu0 0
    %593 = vmatmul.mubr.bf16.gmra.mxu0 %v507
    %v594 = vpop.f32.mrf.mxu0
    %v595 = vadd.f32 %v511, %v594
    %v596 = vpop.f32.mrf.mxu0
    %v597 = vpop.f32.mrf.mxu0
    %v598 = vpop.f32.mrf.mxu0
    %599 = vdwg.mxu0
    %600 = vst [vmem:[#allocation8] sm:$0xff] %v595
    // Predicated region
    $region26: #{tpu_custom_call.1} parent=1 // pred_check
      _
    $region27: #{tpu_custom_call.1} parent=1 // pred_check_branch
      %602 = sbr.rel (0) target = $region29
    $region28: #{tpu_custom_call.1} parent=1 // pred_region
      %s604 = ssub.s32 128, 128
      %605 = vsyncadd [#allocation4], %s604
      %s607 = sshll.u32 [#allocation8], 4
      %s608 = int_to_ptr.vmem [resolvable:$true] %s607
      %610 = dma.vmem_to_hbm [thread:$0]  %s608, 128, %s3, [#allocation4]
    $region29: #{tpu_custom_call.1} parent=1 // pred_fallthru
      _
    // Predicated region
    $region30: #{tpu_custom_call.1} parent=1 // pred_check
      _
    $region31: #{tpu_custom_call.1} parent=1 // pred_check_branch
      %612 = sbr.rel (0) target = $region33
    $region32: #{tpu_custom_call.1} parent=1 // pred_region
      %613 = dma.done [#allocation4], 128
    $region33: #{tpu_custom_call.1} parent=1 // pred_fallthru
      _
    %614 = vsyncpa [#allocation3], 1
    %615 = vsyncpa [#allocation6], 1
    %616 = vsyncpa [#allocation4], 1

</llo_original>
